<compile_context>
chip_gen: v7x
topology: tpu7x:2x2x1
jax: 0.10.0
libtpu: 0.0.40
codegen_flags: <defaults>
</compile_context>

<pallas_src>
import functools

import jax
import jax.numpy as jnp
from jax.experimental import pallas as pl
from jax.experimental.pallas import tpu as pltpu

_LANE = 128
_NEG_MASK = -1e30  # finite "-inf" for padded action lanes; exp() underflows to 0.


def _round_up(n: int, m: int) -> int:
    return ((n + m - 1) // m) * m


def _cdiv(a: int, b: int) -> int:
    return (a + b - 1) // b


def _policy_kernel(x_ref, w1_ref, b1_ref, w2_ref, b2_ref, out_ref, *, action_size):
    # fc1 + ReLU (MXU matmul, f32 accumulation).
    h = jnp.dot(x_ref[...], w1_ref[...], preferred_element_type=jnp.float32) + b1_ref[...]
    h = jnp.maximum(h, 0.0)
    # fc2 -> logits over the lane-padded action axis. Padded lanes carry the
    # -1e30 bias baked into b2 (and zero W2 columns), so no in-kernel mask.
    logits = jnp.dot(h, w2_ref[...], preferred_element_type=jnp.float32) + b2_ref[...]
    # Numerically-stable softmax along the action (lane) axis. Exact division so
    # rows sum to 1 (needed for REINFORCE log-prob / categorical sampling).
    m = jnp.max(logits, axis=-1, keepdims=True)
    e = jnp.exp(logits - m)
    denom = jnp.sum(e, axis=-1, keepdims=True)
    probs = e / denom
    # Store only the real action columns (block last dim == full array dim):
    # masked vst on a tiny output beats a 64x-inflated padded HBM writeback.
    out_ref[...] = probs[:, :action_size].astype(out_ref.dtype)
    # TODO(synk): optionally fuse Gumbel-max categorical sampling here
    # (pltpu.prng_seed + pltpu.prng_random_bits) to emit (action, log-prob)
    # directly instead of the probability matrix.


def prepare_params(w1_t, b1, w2_t, b2):
    """One-time padding / casting of params into the kernel layout.

    Call once at init (not per forward). Returns (w1_p, b1_p, w2_p, b2_p):
      w1_p: (state, hidden) f32
      b1_p: (1, hidden)     f32
      w2_p: (hidden, a_pad) f32, action axis zero-padded to a multiple of 128
      b2_p: (1, a_pad)      f32, padded action lanes set to -1e30 (softmax mask)
    """
    state_size, hidden = w1_t.shape
    action_size = w2_t.shape[1]
    a_pad = _round_up(max(action_size, _LANE), _LANE)
    w1_p = w1_t.astype(jnp.float32)
    b1_p = b1.reshape(1, hidden).astype(jnp.float32)
    w2_p = jnp.zeros((hidden, a_pad), jnp.float32).at[:, :action_size].set(
        w2_t.astype(jnp.float32))
    b2_p = jnp.full((1, a_pad), _NEG_MASK, jnp.float32).at[:, :action_size].set(
        b2.reshape(1, action_size).astype(jnp.float32))
    return w1_p, b1_p, w2_p, b2_p


def policy_forward(x, w1_p, b1_p, w2_p, b2_p, *, action_size, tile_batch=1024):
    """x: (B, state) f32; params from prepare_params. Returns (B, action) probs."""
    B, state_size = x.shape
    hidden = w1_p.shape[1]
    a_pad = w2_p.shape[1]
    x = x.astype(jnp.float32)

    # ---- batch tiling: tile is a multiple of 8, batch padded to the tile ----
    tb = min(_round_up(tile_batch, 8), _round_up(B, 8))
    # v7x has 2 TensorCores: dimension_semantics=("parallel",) only helps if the
    # grid has >=2 steps, so split big batches in two. Costs at most one extra
    # ~0.35us grid step on single-TC v5e/v6e.
    if _round_up(B, 8) >= 256 and (_round_up(B, tb) // tb) < 2:
        tb = _round_up(_cdiv(B, 2), 8)
    b_pad = _round_up(B, tb)
    if b_pad != B:
        x = jnp.pad(x, ((0, b_pad - B), (0, 0)))
    grid = (b_pad // tb,)

    kernel = functools.partial(_policy_kernel, action_size=action_size)

    cost = pl.CostEstimate(
        flops=2 * b_pad * (state_size * hidden + hidden * a_pad),
        transcendentals=b_pad * a_pad,
        bytes_accessed=4 * (b_pad * state_size + state_size * hidden + hidden
                            + hidden * a_pad + a_pad + b_pad * action_size),
    )

    out = pl.pallas_call(
        kernel,
        out_shape=jax.ShapeDtypeStruct((b_pad, action_size), jnp.float32),
        grid_spec=pltpu.PrefetchScalarGridSpec(
            num_scalar_prefetch=0,
            grid=grid,
            in_specs=[
                pl.BlockSpec((tb, state_size), lambda i: (i, 0)),       # x tile
                pl.BlockSpec((state_size, hidden), lambda i: (0, 0)),   # W1^T resident
                pl.BlockSpec((1, hidden), lambda i: (0, 0)),            # b1 resident
                pl.BlockSpec((hidden, a_pad), lambda i: (0, 0)),        # W2^T resident
                pl.BlockSpec((1, a_pad), lambda i: (0, 0)),             # b2 resident (mask baked in)
            ],
            out_specs=pl.BlockSpec((tb, action_size), lambda i: (i, 0)),
        ),
        compiler_params=pltpu.CompilerParams(
            dimension_semantics=("parallel",)),
        cost_estimate=cost,
    )(x, w1_p, b1_p, w2_p, b2_p)

    # TODO(synk): for very large hidden/state sizes, chunk the hidden axis and
    # cast MXU operands to bf16 on v6e/v7x (keep f32 epilogue, esp. on v5e).
    return out[:B] if b_pad != B else out


def init_params(key, state_size, action_size, hidden_layer_size):
    """Deterministic init mimicking nn.Linear's U(-1/sqrt(fan_in), 1/sqrt(fan_in))."""
    k1, k2, k3, k4 = jax.random.split(key, 4)
    lim1 = 1.0 / jnp.sqrt(jnp.float32(state_size))
    lim2 = 1.0 / jnp.sqrt(jnp.float32(hidden_layer_size))
    # stored already transposed: (in_features, out_features)
    w1_t = jax.random.uniform(k1, (state_size, hidden_layer_size),
                              jnp.float32, -lim1, lim1)
    b1 = jax.random.uniform(k2, (1, hidden_layer_size), jnp.float32, -lim1, lim1)
    w2_t = jax.random.uniform(k3, (hidden_layer_size, action_size),
                              jnp.float32, -lim2, lim2)
    b2 = jax.random.uniform(k4, (1, action_size), jnp.float32, -lim2, lim2)
    return w1_t, b1, w2_t, b2


def reference_forward(x, w1_t, b1, w2_t, b2):
    h = jnp.maximum(x @ w1_t + b1, 0.0)
    logits = h @ w2_t + b2
    return jax.nn.softmax(logits, axis=1)


if __name__ == "__main__":
    # Small shapes consistent with a REINFORCE policy (e.g. CartPole-like).
    batch, state_size, action_size, hidden = 8, 4, 2, 32

    key = jax.random.PRNGKey(0)
    kx, kp = jax.random.split(key)
    x = jax.random.normal(kx, (batch, state_size), jnp.float32)
    w1_t, b1, w2_t, b2 = init_params(kp, state_size, action_size, hidden)

    # One-time parameter prep (pad + cast + bias mask) hoisted off the hot path.
    w1_p, b1_p, w2_p, b2_p = prepare_params(w1_t, b1, w2_t, b2)

    out = jax.block_until_ready(
        policy_forward(x, w1_p, b1_p, w2_p, b2_p, action_size=action_size))
    ref = reference_forward(x, w1_t, b1, w2_t, b2)
    assert out.shape == (batch, action_size)
    assert jnp.allclose(out, ref, atol=2e-3, rtol=2e-3)
    # Exact-division softmax: rows sum to 1 to f32 rounding.
    assert jnp.allclose(jnp.sum(out, axis=1), jnp.ones((batch,)), atol=1e-4)

    # Policy.act-style single-state call (batch of 1, padded to one 8-row tile).
    out1 = jax.block_until_ready(
        policy_forward(x[:1], w1_p, b1_p, w2_p, b2_p, action_size=action_size))
    assert out1.shape == (1, action_size)
    assert jnp.allclose(out1, ref[:1], atol=2e-3, rtol=2e-3)

    # Larger rollout batch: multiple tiles + batch padding in one pallas_call.
    xb = jax.random.normal(kx, (300, state_size), jnp.float32)
    outb = jax.block_until_ready(
        policy_forward(xb, w1_p, b1_p, w2_p, b2_p, action_size=action_size,
                       tile_batch=128))
    refb = reference_forward(xb, w1_t, b1, w2_t, b2)
    assert outb.shape == (300, action_size)
    assert jnp.allclose(outb, refb, atol=2e-3, rtol=2e-3)
    assert jnp.allclose(jnp.sum(outb, axis=1), jnp.ones((300,)), atol=1e-4)

    print("KERNEL_OK")
</pallas_src>

<mosaic_0001>
module attributes {stable_mosaic.version = 11 : i64} {
  func.func @_policy_kernel(%arg0: i32, %arg1: memref<8x4xf32, #tpu.memory_space<vmem>>, %arg2: memref<4x32xf32, #tpu.memory_space<vmem>>, %arg3: memref<1x32xf32, #tpu.memory_space<vmem>>, %arg4: memref<32x128xf32, #tpu.memory_space<vmem>>, %arg5: memref<1x128xf32, #tpu.memory_space<vmem>>, %arg6: memref<8x2xf32, #tpu.memory_space<vmem>>) attributes {dimension_semantics = [#tpu.dimension_semantics<parallel>], iteration_bounds = array<i64: 1>, scalar_prefetch = 0 : i64, scratch_operands = 0 : i64, tpu.core_type = #tpu.core_type<tc>, window_params = [{transform_indices = @transform_0, window_bounds = array<i64: 8, 4>}, {pipeline_mode = #tpu.pipeline_mode<synchronous>, transform_indices = @transform_1, window_bounds = array<i64: 4, 32>}, {pipeline_mode = #tpu.pipeline_mode<synchronous>, transform_indices = @transform_2, window_bounds = array<i64: 1, 32>}, {pipeline_mode = #tpu.pipeline_mode<synchronous>, transform_indices = @transform_3, window_bounds = array<i64: 32, 128>}, {pipeline_mode = #tpu.pipeline_mode<synchronous>, transform_indices = @transform_4, window_bounds = array<i64: 1, 128>}, {transform_indices = @transform_5, window_bounds = array<i64: 8, 2>}]} {
    %c0 = arith.constant 0 : index
    %c0_0 = arith.constant 0 : index
    %0 = vector.load %arg1[%c0, %c0_0] : memref<8x4xf32, #tpu.memory_space<vmem>>, vector<8x4xf32>
    %c0_1 = arith.constant 0 : index
    %c0_2 = arith.constant 0 : index
    %1 = vector.load %arg2[%c0_1, %c0_2] : memref<4x32xf32, #tpu.memory_space<vmem>>, vector<4x32xf32>
    %cst = arith.constant dense<0.000000e+00> : vector<8x32xf32>
    %2 = tpu.matmul %0, %1, %cst {dimension_numbers = #tpu.dot_dimension_numbers<[1], [0], [0], [1], [0, 0, 1, 1], [], []>} : vector<8x4xf32>, vector<4x32xf32>, vector<8x32xf32> -> vector<8x32xf32>
    %c0_3 = arith.constant 0 : index
    %c0_4 = arith.constant 0 : index
    %3 = vector.load %arg3[%c0_3, %c0_4] : memref<1x32xf32, #tpu.memory_space<vmem>>, vector<1x32xf32>
    %4 = vector.broadcast %3 : vector<1x32xf32> to vector<8x32xf32>
    %5 = arith.addf %2, %4 : vector<8x32xf32>
    %cst_5 = arith.constant 0.000000e+00 : f32
    %6 = vector.broadcast %cst_5 : f32 to vector<8x32xf32>
    %7 = arith.maximumf %5, %6 : vector<8x32xf32>
    %c0_6 = arith.constant 0 : index
    %c0_7 = arith.constant 0 : index
    %8 = vector.load %arg4[%c0_6, %c0_7] : memref<32x128xf32, #tpu.memory_space<vmem>>, vector<32x128xf32>
    %cst_8 = arith.constant dense<0.000000e+00> : vector<8x128xf32>
    %9 = tpu.matmul %7, %8, %cst_8 {dimension_numbers = #tpu.dot_dimension_numbers<[1], [0], [0], [1], [0, 0, 1, 1], [], []>} : vector<8x32xf32>, vector<32x128xf32>, vector<8x128xf32> -> vector<8x128xf32>
    %c0_9 = arith.constant 0 : index
    %c0_10 = arith.constant 0 : index
    %10 = vector.load %arg5[%c0_9, %c0_10] : memref<1x128xf32, #tpu.memory_space<vmem>>, vector<1x128xf32>
    %11 = vector.broadcast %10 : vector<1x128xf32> to vector<8x128xf32>
    %12 = arith.addf %9, %11 : vector<8x128xf32>
    %cst_11 = arith.constant dense<0xFF800000> : vector<8xf32>
    %13 = vector.multi_reduction <maximumf>, %12, %cst_11 [1] : vector<8x128xf32> to vector<8xf32>
    %14 = vector.shape_cast %13 : vector<8xf32> to vector<8x1xf32>
    %15 = vector.broadcast %14 : vector<8x1xf32> to vector<8x128xf32>
    %16 = arith.subf %12, %15 : vector<8x128xf32>
    %17 = math.exp %16 : vector<8x128xf32>
    %cst_12 = arith.constant dense<0.000000e+00> : vector<8xf32>
    %18 = vector.multi_reduction <add>, %17, %cst_12 [1] : vector<8x128xf32> to vector<8xf32>
    %19 = vector.shape_cast %18 : vector<8xf32> to vector<8x1xf32>
    %20 = vector.broadcast %19 : vector<8x1xf32> to vector<8x128xf32>
    %21 = arith.divf %17, %20 : vector<8x128xf32>
    %22 = vector.extract_strided_slice %21 {offsets = [0, 0], sizes = [8, 2], strides = [1, 1]} : vector<8x128xf32> to vector<8x2xf32>
    %c0_13 = arith.constant 0 : index
    %c0_14 = arith.constant 0 : index
    %23 = vector.load %arg6[%c0_13, %c0_14] : memref<8x2xf32, #tpu.memory_space<vmem>>, vector<8x2xf32>
    tpu.vector_store %arg6[%c0_13, %c0_14], %22 {strides = array<i32>} : memref<8x2xf32, #tpu.memory_space<vmem>>, vector<8x2xf32>,
    return
  }
  func.func @transform_0(%arg0: i32) -> (i32, i32) {
    %c0_i32 = arith.constant 0 : i32
    %c0_i32_0 = arith.constant 0 : i32
    return %arg0, %c0_i32 : i32, i32
  }
  func.func @transform_1(%arg0: i32) -> (i32, i32) {
    %c0_i32 = arith.constant 0 : i32
    %c0_i32_0 = arith.constant 0 : i32
    %c0_i32_1 = arith.constant 0 : i32
    return %c0_i32, %c0_i32_0 : i32, i32
  }
  func.func @transform_2(%arg0: i32) -> (i32, i32) {
    %c0_i32 = arith.constant 0 : i32
    %c0_i32_0 = arith.constant 0 : i32
    %c0_i32_1 = arith.constant 0 : i32
    return %c0_i32, %c0_i32_0 : i32, i32
  }
  func.func @transform_3(%arg0: i32) -> (i32, i32) {
    %c0_i32 = arith.constant 0 : i32
    %c0_i32_0 = arith.constant 0 : i32
    %c0_i32_1 = arith.constant 0 : i32
    return %c0_i32, %c0_i32_0 : i32, i32
  }
  func.func @transform_4(%arg0: i32) -> (i32, i32) {
    %c0_i32 = arith.constant 0 : i32
    %c0_i32_0 = arith.constant 0 : i32
    %c0_i32_1 = arith.constant 0 : i32
    return %c0_i32, %c0_i32_0 : i32, i32
  }
  func.func @transform_5(%arg0: i32) -> (i32, i32) {
    %c0_i32 = arith.constant 0 : i32
    %c0_i32_0 = arith.constant 0 : i32
    return %arg0, %c0_i32 : i32, i32
  }
}

</mosaic_0001>

<llo_original>
// kernel: tpu_custom_call.1
$region0: #{tpu_custom_call.1}
  #allocation0 [shape = 'u32[]', space=smem, size = 0x4, offset = 0x4, fixed_abs, tag = 'smem constant byte address 0x4 - core index']
  #allocation1 [shape = 'u32[144,128]{1,0:T(1,128)}', space=vmem, size = 0x12000, scoped, tag = 'internal scratch']
  %s0 = inlined_call_operand.vmem [shape: f32[8,4], index: 0, kind: input, shape index: {}]
  %s1 = inlined_call_operand.vmem [shape: f32[4,32], index: 1, kind: input, shape index: {}]
  %s2 = inlined_call_operand.vmem [shape: f32[1,32], index: 2, kind: input, shape index: {}]
  %s3 = inlined_call_operand.hbm [shape: f32[32,128], index: 3, kind: input, shape index: {}]
  %s4 = inlined_call_operand.vmem [shape: f32[1,128], index: 4, kind: input, shape index: {}]
  %s5 = inlined_call_operand.vmem [shape: f32[8,2], index: 5, kind: output, shape index: {}]
  %s6 = sld [smem:[#allocation0]]
  $region34: #{tpu_custom_call.1} parent=0
    _
  %s8 = ssub.s32 1, %s6
  %s9 = scalar_select 0, %s8, %s6
  $region1: #{tpu_custom_call.1} parent=0
    #allocation2 [shape = 'u8[16384]{0}', space=vmem, size = 0x4000, scoped, tag = 'input window, operand 3, single buffered']
    #allocation3 [shape = 's32[1]{0}', space=sflag, size = 0x4, scoped, tag = 'scoped memory for tpu_custom_call.1']
    %10 = vsyncpa [#allocation3], 0
    // Predicated region
    $region2: #{tpu_custom_call.1} parent=1 // pred_check
      _
    $region3: #{tpu_custom_call.1} parent=1 // pred_check_branch
      %12 = sbr.rel (0) target = $region5
    $region4: #{tpu_custom_call.1} parent=1 // pred_region
      _
    $region5: #{tpu_custom_call.1} parent=1 // pred_fallthru
      _
    // Predicated region
    $region6: #{tpu_custom_call.1} parent=1 // pred_check
      _
    $region7: #{tpu_custom_call.1} parent=1 // pred_check_branch
      %14 = sbr.rel (0) target = $region9
    $region8: #{tpu_custom_call.1} parent=1 // pred_region
      _
    $region9: #{tpu_custom_call.1} parent=1 // pred_fallthru
      _
    // Predicated region
    $region10: #{tpu_custom_call.1} parent=1 // pred_check
      _
    $region11: #{tpu_custom_call.1} parent=1 // pred_check_branch
      %16 = sbr.rel (0) target = $region13
    $region12: #{tpu_custom_call.1} parent=1 // pred_region
      _
    $region13: #{tpu_custom_call.1} parent=1 // pred_fallthru
      _
    // Predicated region
    $region14: #{tpu_custom_call.1} parent=1 // pred_check
      _
    $region15: #{tpu_custom_call.1} parent=1 // pred_check_branch
      %18 = sbr.rel (0) target = $region17
    $region16: #{tpu_custom_call.1} parent=1 // pred_region
      %s20 = ssub.s32 512, 512
      %21 = vsyncadd [#allocation3], %s20
      %s22 = sshll.u32 [#allocation2], 4
      %s23 = int_to_ptr.vmem [resolvable:$true] %s22
      %28 = dma.hbm_to_vmem [thread:$0]  %s3, 512, %s23, [#allocation3], 128, 128, 8
    $region17: #{tpu_custom_call.1} parent=1 // pred_fallthru
      _
    // Predicated region
    $region18: #{tpu_custom_call.1} parent=1 // pred_check
      _
    $region19: #{tpu_custom_call.1} parent=1 // pred_check_branch
      %30 = sbr.rel (0) target = $region21
    $region20: #{tpu_custom_call.1} parent=1 // pred_region
      _
    $region21: #{tpu_custom_call.1} parent=1 // pred_fallthru
      _
    // Predicated region
    $region22: #{tpu_custom_call.1} parent=1 // pred_check
      _
    $region23: #{tpu_custom_call.1} parent=1 // pred_check_branch
      %32 = sbr.rel (0) target = $region25
    $region24: #{tpu_custom_call.1} parent=1 // pred_region
      %33 = dma.done [#allocation3], 512
    $region25: #{tpu_custom_call.1} parent=1 // pred_fallthru
      _
    %v34 = vld [vmem:[%s0] sm:$0xff]
    %v35 = vld [vmem:[%s1] sm:$0xf]
    %v36 = vld [vmem:[%s2] sm:$0x1]
    %v38 = vlaneseq
    %v39 = vshrl.u32 %v38, 7
    %v40 = vsub.s32 0, %v39
    %v41 = vrot.slane %v36, %v40
    %vm43 = vcmask 31744
    %v45 = vsel %vm43, %v34, 0
    %vm47 = vcmask 1043456
    %v49 = vsel %vm47, %v35, 0
    %51 = vmatprep.subr.mxu0 0.0
    %52 = vmatpush1.msra.mxu0 %v49
    %53 = vmatprep.subr.mxu0 0.0
    %54 = vmatpush1.msra.mxu0 0.0
    %55 = vmatprep.subr.mxu0 0.0
    %56 = vmatpush1.msra.mxu0 0.0
    %57 = vmatprep.subr.mxu0 0.0
    %58 = vmatpush1.msra.mxu0 0.0
    %59 = vmatprep.subr.mxu0 0.0
    %60 = vmatpush1.msra.mxu0 0.0
    %61 = vmatprep.subr.mxu0 0.0
    %62 = vmatpush1.msra.mxu0 0.0
    %63 = vmatprep.subr.mxu0 0.0
    %64 = vmatpush1.msra.mxu0 0.0
    %65 = vmatprep.subr.mxu0 0.0
    %66 = vmatpush1.msra.mxu0 0.0
    %67 = vmatprep.subr.mxu0 0.0
    %68 = vmatpush1.msra.mxu0 0.0
    %69 = vmatprep.subr.mxu0 0.0
    %70 = vmatpush1.msra.mxu0 0.0
    %71 = vmatprep.subr.mxu0 0.0
    %72 = vmatpush1.msra.mxu0 0.0
    %73 = vmatprep.subr.mxu0 0.0
    %74 = vmatpush1.msra.mxu0 0.0
    %75 = vmatprep.subr.mxu0 0.0
    %76 = vmatpush1.msra.mxu0 0.0
    %77 = vmatprep.subr.mxu0 0.0
    %78 = vmatpush1.msra.mxu0 0.0
    %79 = vmatprep.subr.mxu0 0.0
    %80 = vmatpush1.msra.mxu0 0.0
    %81 = vmatprep.subr.mxu0 0.0
    %82 = vmatpush1.msra.mxu0 0.0
    %83 = vmatprep.subr.mxu0 0.0
    %84 = vmatpush1.msra.mxu0 0.0
    %85 = vmatprep.subr.mxu0 0.0
    %86 = vmatpush1.msra.mxu0 0.0
    %87 = vmatprep.subr.mxu0 0.0
    %88 = vmatpush1.msra.mxu0 0.0
    %89 = vmatprep.subr.mxu0 0.0
    %90 = vmatpush1.msra.mxu0 0.0
    %91 = vmatprep.subr.mxu0 0.0
    %92 = vmatpush1.msra.mxu0 0.0
    %93 = vmatprep.subr.mxu0 0.0
    %94 = vmatpush1.msra.mxu0 0.0
    %95 = vmatprep.subr.mxu0 0.0
    %96 = vmatpush1.msra.mxu0 0.0
    %97 = vmatprep.subr.mxu0 0.0
    %98 = vmatpush1.msra.mxu0 0.0
    %99 = vmatprep.subr.mxu0 0.0
    %100 = vmatpush1.msra.mxu0 0.0
    %101 = vmatprep.subr.mxu0 0.0
    %102 = vmatpush1.msra.mxu0 0.0
    %103 = vmatprep.subr.mxu0 0.0
    %104 = vmatpush1.msra.mxu0 0.0
    %105 = vmatprep.subr.mxu0 0.0
    %106 = vmatpush1.msra.mxu0 0.0
    %107 = vmatprep.subr.mxu0 0.0
    %108 = vmatpush1.msra.mxu0 0.0
    %109 = vmatprep.subr.mxu0 0.0
    %110 = vmatpush1.msra.mxu0 0.0
    %111 = vmatprep.subr.mxu0 0.0
    %112 = vmatpush1.msra.mxu0 0.0
    %113 = vmatprep.subr.mxu0 0.0
    %114 = vmatpush1.msra.mxu0 0.0
    %115 = vmatprep.mubr.f32.mxu0 0.0
    %116 = vmatmul.mubr.f32.gmra.mrb[0].mxu0 %v45
    %v117 = vpop.f32.mrb[0].mxu0
    %v118 = vadd.f32 %v41, %v117
    %v119 = vpop.f32.mrb[0].mxu0
    %120 = vdwg.mxu0
    %v121 = vmax.f32 %v118, 0.0
    %v122 = vld [vmem:[#allocation2] sm:$0xff]
    %v123 = vld [vmem:[#allocation2 + $0x8] sm:$0xff]
    %v124 = vld [vmem:[#allocation2 + $0x10] sm:$0xff]
    %v125 = vld [vmem:[#allocation2 + $0x18] sm:$0xff]
    %v126 = vld [vmem:[%s4] sm:$0x1]
    %v128 = vlaneseq
    %v129 = vshrl.u32 %v128, 7
    %v130 = vsub.s32 0, %v129
    %v131 = vrot.slane %v126, %v130
    %vm133 = vcmask 261120
    %v135 = vsel %vm133, %v121, 0
    %137 = vmatprep.subr.mxu0 0.0
    %138 = vmatpush1.msra.mxu0 %v122
    %139 = vmatprep.subr.mxu0 0.0
    %140 = vmatpush1.msra.mxu0 %v123
    %141 = vmatprep.subr.mxu0 0.0
    %142 = vmatpush1.msra.mxu0 %v124
    %143 = vmatprep.subr.mxu0 0.0
    %144 = vmatpush1.msra.mxu0 %v125
    %145 = vmatprep.subr.mxu0 0.0
    %146 = vmatpush1.msra.mxu0 0.0
    %147 = vmatprep.subr.mxu0 0.0
    %148 = vmatpush1.msra.mxu0 0.0
    %149 = vmatprep.subr.mxu0 0.0
    %150 = vmatpush1.msra.mxu0 0.0
    %151 = vmatprep.subr.mxu0 0.0
    %152 = vmatpush1.msra.mxu0 0.0
    %153 = vmatprep.subr.mxu0 0.0
    %154 = vmatpush1.msra.mxu0 0.0
    %155 = vmatprep.subr.mxu0 0.0
    %156 = vmatpush1.msra.mxu0 0.0
    %157 = vmatprep.subr.mxu0 0.0
    %158 = vmatpush1.msra.mxu0 0.0
    %159 = vmatprep.subr.mxu0 0.0
    %160 = vmatpush1.msra.mxu0 0.0
    %161 = vmatprep.subr.mxu0 0.0
    %162 = vmatpush1.msra.mxu0 0.0
    %163 = vmatprep.subr.mxu0 0.0
    %164 = vmatpush1.msra.mxu0 0.0
    %165 = vmatprep.subr.mxu0 0.0
    %166 = vmatpush1.msra.mxu0 0.0
    %167 = vmatprep.subr.mxu0 0.0
    %168 = vmatpush1.msra.mxu0 0.0
    %169 = vmatprep.subr.mxu0 0.0
    %170 = vmatpush1.msra.mxu0 0.0
    %171 = vmatprep.subr.mxu0 0.0
    %172 = vmatpush1.msra.mxu0 0.0
    %173 = vmatprep.subr.mxu0 0.0
    %174 = vmatpush1.msra.mxu0 0.0
    %175 = vmatprep.subr.mxu0 0.0
    %176 = vmatpush1.msra.mxu0 0.0
    %177 = vmatprep.subr.mxu0 0.0
    %178 = vmatpush1.msra.mxu0 0.0
    %179 = vmatprep.subr.mxu0 0.0
    %180 = vmatpush1.msra.mxu0 0.0
    %181 = vmatprep.subr.mxu0 0.0
    %182 = vmatpush1.msra.mxu0 0.0
    %183 = vmatprep.subr.mxu0 0.0
    %184 = vmatpush1.msra.mxu0 0.0
    %185 = vmatprep.subr.mxu0 0.0
    %186 = vmatpush1.msra.mxu0 0.0
    %187 = vmatprep.subr.mxu0 0.0
    %188 = vmatpush1.msra.mxu0 0.0
    %189 = vmatprep.subr.mxu0 0.0
    %190 = vmatpush1.msra.mxu0 0.0
    %191 = vmatprep.subr.mxu0 0.0
    %192 = vmatpush1.msra.mxu0 0.0
    %193 = vmatprep.subr.mxu0 0.0
    %194 = vmatpush1.msra.mxu0 0.0
    %195 = vmatprep.subr.mxu0 0.0
    %196 = vmatpush1.msra.mxu0 0.0
    %197 = vmatprep.subr.mxu0 0.0
    %198 = vmatpush1.msra.mxu0 0.0
    %199 = vmatprep.subr.mxu0 0.0
    %200 = vmatpush1.msra.mxu0 0.0
    %201 = vmatprep.mubr.f32.mxu0 0.0
    %202 = vmatmul.mubr.f32.gmra.mrb[0].mxu0 %v135
    %v203 = vpop.f32.mrb[0].mxu0
    %v204 = vadd.f32 %v131, %v203
    %v205 = vpop.f32.mrb[0].mxu0
    %206 = vdwg.mxu0
    %207 = vmax.xlane.f32.xlu0 %v204
    %v208 = vpop.xlane.xlu0 %207
    %v209 = vsub.f32 %v204, %v208
    %v210 = vmul.f32 %v209, 1.442695
    %v211 = vpow.pop %v210
    %212 = vadd.xlane.f32.xlu0 %v211
    %v213 = vpop.xlane.xlu0 %212
    %v214 = vrcp.pop %v213
    %v215 = vmul.f32 %v211, %v214
    %vm216 = vcmask 15360
    %217 = vst.msk [vmem:[%s5] sm:$0xff] %vm216, %v215
    // Predicated region
    $region26: #{tpu_custom_call.1} parent=1 // pred_check
      _
    $region27: #{tpu_custom_call.1} parent=1 // pred_check_branch
      %219 = sbr.rel (0) target = $region29
    $region28: #{tpu_custom_call.1} parent=1 // pred_region
      _
    $region29: #{tpu_custom_call.1} parent=1 // pred_fallthru
      _
    // Predicated region
    $region30: #{tpu_custom_call.1} parent=1 // pred_check
      _
    $region31: #{tpu_custom_call.1} parent=1 // pred_check_branch
      %221 = sbr.rel (0) target = $region33
    $region32: #{tpu_custom_call.1} parent=1 // pred_region
      _
    $region33: #{tpu_custom_call.1} parent=1 // pred_fallthru
      _
    %222 = vsyncpa [#allocation3], 1

</llo_original>
